<compile_context>
chip_gen: v5e
topology: v5e:2x2
jax: 0.10.0
libtpu: 0.0.40
codegen_flags: <defaults>
</compile_context>

<pallas_src>
import functools
import math

import jax
import jax.numpy as jnp
from jax.experimental import pallas as pl
from jax.experimental.pallas import tpu as pltpu


def _round_up(x, m):
    return (x + m - 1) // m * m


def _cdiv(a, b):
    return -(-a // b)


# ----------------------------------------------------------------------------
# Pallas kernel: one batch tile (TB sequences -> N = TB*D lanes) per grid step.
# ----------------------------------------------------------------------------
def fmlp_kernel(x_ref, cf2_ref, ai2_ref, wa_ref, wb_ref,
                gsum_ref, gbcast_ref, g_ref, b_ref, o_ref, *, fp, eps):
    x = x_ref[...]                                            # (S, N) f32

    # --- rfft along seq (norm='ortho'); Re/Im stacked: xs = [Xr; Xi] --------
    xs = jnp.dot(cf2_ref[...], x.astype(jnp.bfloat16),
                 preferred_element_type=jnp.float32)          # (2FP, N) f32

    # --- learnable complex filter on the stacked spectrum (f32, VPU+XLU) ----
    #   [yr; yi] = [xr; xi] * [wr; wr] + [xi; xr] * [-wi; wi]
    xs_sw = pltpu.roll(xs, shift=fp, axis=0)                  # [xi; xr]
    ys = xs * wa_ref[...] + xs_sw * wb_ref[...]               # (2FP, N) f32

    # --- irfft back to (S, N) (norm='ortho', n=S) ---------------------------
    y = jnp.dot(ai2_ref[...], ys.astype(jnp.bfloat16),
                preferred_element_type=jnp.float32)           # (S, N) f32

    # --- dropout (identity in eval) + residual + LayerNorm over d_model -----
    # Factored per-D-group statistics, all in f32, centered two-pass variance.
    h = y + x                                                 # (S, N)
    gsum = gsum_ref[...]                                      # (N, TB): 1/D col-sums
    gbc = gbcast_ref[...]                                     # (TB, N): broadcast back
    mean = jnp.dot(jnp.dot(h, gsum, preferred_element_type=jnp.float32),
                   gbc, preferred_element_type=jnp.float32)   # (S, N)
    c = h - mean
    var = jnp.dot(jnp.dot(c * c, gsum, preferred_element_type=jnp.float32),
                  gbc, preferred_element_type=jnp.float32)    # (S, N)
    hn = c * jax.lax.rsqrt(var + eps)
    o_ref[...] = (hn * g_ref[...] + b_ref[...]).astype(o_ref.dtype)


# ----------------------------------------------------------------------------
# Host-side helpers
# ----------------------------------------------------------------------------
def _make_dft_operators(S, FP):
    """Stacked, zero-padded, ortho-normalised real rfft / irfft operators."""
    F = S // 2 + 1
    n = jnp.arange(S, dtype=jnp.float32)
    k = jnp.arange(F, dtype=jnp.float32)
    scale = 1.0 / math.sqrt(S)

    ang_f = 2.0 * math.pi * k[:, None] * n[None, :] / S       # (F, S)
    cf = jnp.cos(ang_f) * scale                               # Re(rfft)
    sf = -jnp.sin(ang_f) * scale                              # Im(rfft)

    # multiplicity of each rfft bin in the Hermitian-extended spectrum
    c = jnp.where((k == 0) | (2.0 * k == S), 1.0, 2.0)        # (F,)
    ang_i = 2.0 * math.pi * n[:, None] * k[None, :] / S       # (S, F)
    ai = jnp.cos(ang_i) * c[None, :] * scale                  # acts on Re
    bi = -jnp.sin(ang_i) * c[None, :] * scale                 # acts on Im

    pad_r = ((0, FP - F), (0, 0))
    pad_c = ((0, 0), (0, FP - F))
    cf2 = jnp.concatenate([jnp.pad(cf, pad_r), jnp.pad(sf, pad_r)], axis=0)  # (2FP, S)
    ai2 = jnp.concatenate([jnp.pad(ai, pad_c), jnp.pad(bi, pad_c)], axis=1)  # (S, 2FP)
    return cf2.astype(jnp.bfloat16), ai2.astype(jnp.bfloat16)


def _default_lane_target():
    """Per-generation lane-width target for N = TB*D (review item 1)."""
    try:
        kind = jax.devices()[0].device_kind.lower()
    except Exception:  # pragma: no cover - defensive
        kind = ""
    if "v7" in kind:
        return 2048
    if "v5" in kind:
        return 512
    return 1024


def _choose_batch_tile(B, D, lane_target):
    """Pick (B_pad, TB) so that N = TB*D is a multiple of 128 (lane-dense
    stores), N is close to lane_target, and the grid keeps >= 2 steps when the
    batch allows it (v7x has 2 TensorCores)."""
    q = 128 // math.gcd(D, 128)            # min. sequences per tile for 128-alignment
    g_total = _cdiv(B, q)                  # q-granules needed to cover the batch
    g_tile = max(1, min(lane_target // (q * D), g_total))
    if g_total >= 2 and _cdiv(g_total, g_tile) < 2:
        g_tile = max(1, g_total // 2)      # keep at least 2 parallel grid steps
    n_tiles = _cdiv(g_total, g_tile)
    tb = g_tile * q
    return n_tiles * tb, tb


def filter_mlp_block(x, complex_weight, ln_gamma, ln_beta, *,
                     lane_target=None, out_dtype=jnp.float32):
    """x: (B, S, D) float32; complex_weight: (1, S//2+1, D, 2) -> (B, S, D)."""
    B, S, D = x.shape
    F = S // 2 + 1
    assert complex_weight.shape == (1, F, D, 2)

    FP = _round_up(F, 8)                   # sublane alignment only (no 128 fill)
    if lane_target is None:
        lane_target = _default_lane_target()

    B_pad, TB = _choose_batch_tile(B, D, lane_target)
    N = TB * D
    grid = (B_pad // TB,)

    cf2, ai2 = _make_dft_operators(S, FP)

    # Zero-pad + batch-tile the learnable complex filter, pre-stacked for the
    # roll-based multiply (padded bins are zero, so they contribute nothing).
    wr = jnp.pad(complex_weight[0, :, :, 0], ((0, FP - F), (0, 0)))
    wi = jnp.pad(complex_weight[0, :, :, 1], ((0, FP - F), (0, 0)))
    wr_t = jnp.tile(wr, (1, TB)).astype(jnp.float32)          # (FP, N)
    wi_t = jnp.tile(wi, (1, TB)).astype(jnp.float32)          # (FP, N)
    wa = jnp.concatenate([wr_t, wr_t], axis=0)                # (2FP, N)
    wb = jnp.concatenate([-wi_t, wi_t], axis=0)               # (2FP, N)

    # Factored LayerNorm averaging operators (f32): D-fold fewer flops and
    # O(N*TB) memory versus the old (N,N) block-diagonal matmul.
    eye_tb = jnp.eye(TB, dtype=jnp.float32)
    gsum = jnp.kron(eye_tb, jnp.ones((D, 1), jnp.float32) / D)   # (N, TB)
    gbcast = jnp.kron(eye_tb, jnp.ones((1, D), jnp.float32))     # (TB, N)

    gamma_t = jnp.tile(ln_gamma.reshape(1, D).astype(jnp.float32), (1, TB))  # (1, N)
    beta_t = jnp.tile(ln_beta.reshape(1, D).astype(jnp.float32), (1, TB))    # (1, N)

    # Batch pad (keeps N a multiple of 128) + (B,S,D) -> (S, B_pad*D).
    # NOTE: these transposes are layout plumbing for the (B,S,D) interface;
    # a caller able to negotiate the flat (S, B*D) layout should feed the
    # kernel directly and skip two full HBM passes.
    xp = x.astype(jnp.float32)
    if B_pad != B:
        xp = jnp.pad(xp, ((0, B_pad - B), (0, 0), (0, 0)))
    x_flat = jnp.transpose(xp, (1, 0, 2)).reshape(S, B_pad * D)

    grid_spec = pltpu.PrefetchScalarGridSpec(
        num_scalar_prefetch=0,
        grid=grid,
        in_specs=[
            pl.BlockSpec((S, N), lambda b: (0, b)),            # x slab
            pl.BlockSpec((2 * FP, S), lambda b: (0, 0)),       # stacked rfft op
            pl.BlockSpec((S, 2 * FP), lambda b: (0, 0)),       # stacked irfft op
            pl.BlockSpec((2 * FP, N), lambda b: (0, 0)),       # filter [wr; wr]
            pl.BlockSpec((2 * FP, N), lambda b: (0, 0)),       # filter [-wi; wi]
            pl.BlockSpec((N, TB), lambda b: (0, 0)),           # LN group-sum op
            pl.BlockSpec((TB, N), lambda b: (0, 0)),           # LN broadcast op
            pl.BlockSpec((1, N), lambda b: (0, 0)),            # gamma
            pl.BlockSpec((1, N), lambda b: (0, 0)),            # beta
        ],
        out_specs=pl.BlockSpec((S, N), lambda b: (0, b)),
    )

    # VMEM budget from actual buffer sizes (double-buffered), capped for v7x.
    bytes_io = 2 * S * N * 4                                   # x tile + out tile
    bytes_inv = (2 * FP * S * 2 + S * 2 * FP * 2               # DFT ops (bf16)
                 + 2 * (2 * FP * N * 4)                        # filter (f32)
                 + 2 * (N * TB * 4)                            # LN ops (f32)
                 + 2 * N * 4)                                  # gamma/beta
    vmem_limit = int(min(max(4 * (bytes_io + bytes_inv), 32 * 1024 * 1024),
                         64 * 1024 * 1024))

    steps = grid[0]
    flops_dft = 8 * FP * S * N                                 # 2 spectral matmuls
    flops_ln = 8 * S * N * TB                                  # 4 factored-stat matmuls
    cost = pl.CostEstimate(
        flops=int(steps * (flops_dft + flops_ln)),
        transcendentals=int(steps * S * N),                    # rsqrt per element
        bytes_accessed=int(steps * 2 * S * N * 4 + bytes_inv),
    )

    out_flat = pl.pallas_call(
        functools.partial(fmlp_kernel, fp=FP, eps=1e-12),
        out_shape=jax.ShapeDtypeStruct((S, B_pad * D), out_dtype),
        grid_spec=grid_spec,
        compiler_params=pltpu.CompilerParams(
            dimension_semantics=("parallel",),
            vmem_limit_bytes=vmem_limit),
        cost_estimate=cost,
    )(x_flat, cf2, ai2, wa, wb, gsum, gbcast, gamma_t, beta_t)

    out = jnp.transpose(out_flat.reshape(S, B_pad, D), (1, 0, 2))
    return out[:B]


def reference_fmlp(x, complex_weight, ln_gamma, ln_beta):
    """Pure-JAX reference mirroring the PyTorch forward (eval mode)."""
    B, S, D = x.shape
    w = complex_weight[..., 0] + 1j * complex_weight[..., 1]   # (1, F, D)
    xf = jnp.fft.rfft(x, axis=1, norm="ortho")
    xf = xf * w
    y = jnp.fft.irfft(xf, n=S, axis=1, norm="ortho")
    h = y + x
    mean = jnp.mean(h, axis=-1, keepdims=True)
    var = jnp.mean((h - mean) ** 2, axis=-1, keepdims=True)
    hn = (h - mean) / jnp.sqrt(var + 1e-12)
    return hn * ln_gamma + ln_beta


# ----------------------------------------------------------------------------
if __name__ == "__main__":
    B, S, D = 2, 16, 32          # batch, seq_len (module default 16), d_model
    F = S // 2 + 1
    init_ratio = 1.0

    key = jax.random.PRNGKey(0)
    kx, kw = jax.random.split(key)

    x = jax.random.normal(kx, (B, S, D), dtype=jnp.float32)
    # nn.Parameter(torch.randn(1, S//2+1, D, 2) * init_ratio)
    complex_weight = jax.random.normal(kw, (1, F, D, 2), dtype=jnp.float32) * init_ratio
    # nn.LayerNorm default init: weight = ones, bias = zeros
    ln_gamma = jnp.ones((D,), dtype=jnp.float32)
    ln_beta = jnp.zeros((D,), dtype=jnp.float32)
    # TODO(synk): nn.Dropout is a no-op in eval mode; training-mode RNG dropout is not implemented.

    out = jax.block_until_ready(filter_mlp_block(x, complex_weight, ln_gamma, ln_beta))
    ref = reference_fmlp(x, complex_weight, ln_gamma, ln_beta)

    assert out.shape == (B, S, D)
    assert bool(jnp.all(jnp.isfinite(out)))
    # bf16 spectral matmuls with f32 accumulation (LN statistics are full f32):
    assert jnp.allclose(out, ref, atol=2e-2, rtol=2e-2), \
        float(jnp.max(jnp.abs(out - ref)))
    print("KERNEL_OK")
</pallas_src>

<mosaic_0001>
module attributes {stable_mosaic.version = 11 : i64} {
  func.func @fmlp_kernel(%arg0: i32, %arg1: memref<16x128xf32, #tpu.memory_space<vmem>>, %arg2: memref<32x16xbf16, #tpu.memory_space<vmem>>, %arg3: memref<16x32xbf16, #tpu.memory_space<vmem>>, %arg4: memref<32x128xf32, #tpu.memory_space<vmem>>, %arg5: memref<32x128xf32, #tpu.memory_space<vmem>>, %arg6: memref<128x4xf32, #tpu.memory_space<vmem>>, %arg7: memref<4x128xf32, #tpu.memory_space<vmem>>, %arg8: memref<1x128xf32, #tpu.memory_space<vmem>>, %arg9: memref<1x128xf32, #tpu.memory_space<vmem>>, %arg10: memref<16x128xf32, #tpu.memory_space<vmem>>) attributes {dimension_semantics = [#tpu.dimension_semantics<parallel>], iteration_bounds = array<i64: 1>, scalar_prefetch = 0 : i64, scratch_operands = 0 : i64, tpu.core_type = #tpu.core_type<tc>, window_params = [{transform_indices = @transform_0, window_bounds = array<i64: 16, 128>}, {pipeline_mode = #tpu.pipeline_mode<synchronous>, transform_indices = @transform_1, window_bounds = array<i64: 32, 16>}, {pipeline_mode = #tpu.pipeline_mode<synchronous>, transform_indices = @transform_2, window_bounds = array<i64: 16, 32>}, {pipeline_mode = #tpu.pipeline_mode<synchronous>, transform_indices = @transform_3, window_bounds = array<i64: 32, 128>}, {pipeline_mode = #tpu.pipeline_mode<synchronous>, transform_indices = @transform_4, window_bounds = array<i64: 32, 128>}, {pipeline_mode = #tpu.pipeline_mode<synchronous>, transform_indices = @transform_5, window_bounds = array<i64: 128, 4>}, {pipeline_mode = #tpu.pipeline_mode<synchronous>, transform_indices = @transform_6, window_bounds = array<i64: 4, 128>}, {pipeline_mode = #tpu.pipeline_mode<synchronous>, transform_indices = @transform_7, window_bounds = array<i64: 1, 128>}, {pipeline_mode = #tpu.pipeline_mode<synchronous>, transform_indices = @transform_8, window_bounds = array<i64: 1, 128>}, {transform_indices = @transform_9, window_bounds = array<i64: 16, 128>}]} {
    %c0 = arith.constant 0 : index
    %c0_0 = arith.constant 0 : index
    %0 = vector.load %arg1[%c0, %c0_0] : memref<16x128xf32, #tpu.memory_space<vmem>>, vector<16x128xf32>
    %c0_1 = arith.constant 0 : index
    %c0_2 = arith.constant 0 : index
    %1 = vector.load %arg2[%c0_1, %c0_2] : memref<32x16xbf16, #tpu.memory_space<vmem>>, vector<32x16xbf16>
    %2 = arith.truncf %0 : vector<16x128xf32> to vector<16x128xbf16>
    %cst = arith.constant dense<0.000000e+00> : vector<32x128xf32>
    %3 = tpu.matmul %1, %2, %cst {dimension_numbers = #tpu.dot_dimension_numbers<[1], [0], [0], [1], [0, 0, 1, 1], [], []>} : vector<32x16xbf16>, vector<16x128xbf16>, vector<32x128xf32> -> vector<32x128xf32>
    %c16_i32 = arith.constant 16 : i32
    %4 = tpu.dynamic_rotate %3 by %c16_i32 dim 0 : vector<32x128xf32>, i32 -> vector<32x128xf32>
    %c0_3 = arith.constant 0 : index
    %c0_4 = arith.constant 0 : index
    %5 = vector.load %arg4[%c0_3, %c0_4] : memref<32x128xf32, #tpu.memory_space<vmem>>, vector<32x128xf32>
    %6 = arith.mulf %3, %5 : vector<32x128xf32>
    %c0_5 = arith.constant 0 : index
    %c0_6 = arith.constant 0 : index
    %7 = vector.load %arg5[%c0_5, %c0_6] : memref<32x128xf32, #tpu.memory_space<vmem>>, vector<32x128xf32>
    %8 = arith.mulf %4, %7 : vector<32x128xf32>
    %9 = arith.addf %6, %8 : vector<32x128xf32>
    %c0_7 = arith.constant 0 : index
    %c0_8 = arith.constant 0 : index
    %10 = vector.load %arg3[%c0_7, %c0_8] : memref<16x32xbf16, #tpu.memory_space<vmem>>, vector<16x32xbf16>
    %11 = arith.truncf %9 : vector<32x128xf32> to vector<32x128xbf16>
    %cst_9 = arith.constant dense<0.000000e+00> : vector<16x128xf32>
    %12 = tpu.matmul %10, %11, %cst_9 {dimension_numbers = #tpu.dot_dimension_numbers<[1], [0], [0], [1], [0, 0, 1, 1], [], []>} : vector<16x32xbf16>, vector<32x128xbf16>, vector<16x128xf32> -> vector<16x128xf32>
    %13 = arith.addf %12, %0 : vector<16x128xf32>
    %c0_10 = arith.constant 0 : index
    %c0_11 = arith.constant 0 : index
    %14 = vector.load %arg6[%c0_10, %c0_11] : memref<128x4xf32, #tpu.memory_space<vmem>>, vector<128x4xf32>
    %c0_12 = arith.constant 0 : index
    %c0_13 = arith.constant 0 : index
    %15 = vector.load %arg7[%c0_12, %c0_13] : memref<4x128xf32, #tpu.memory_space<vmem>>, vector<4x128xf32>
    %cst_14 = arith.constant dense<0.000000e+00> : vector<16x4xf32>
    %16 = tpu.matmul %13, %14, %cst_14 {dimension_numbers = #tpu.dot_dimension_numbers<[1], [0], [0], [1], [0, 0, 1, 1], [], []>} : vector<16x128xf32>, vector<128x4xf32>, vector<16x4xf32> -> vector<16x4xf32>
    %cst_15 = arith.constant dense<0.000000e+00> : vector<16x128xf32>
    %17 = tpu.matmul %16, %15, %cst_15 {dimension_numbers = #tpu.dot_dimension_numbers<[1], [0], [0], [1], [0, 0, 1, 1], [], []>} : vector<16x4xf32>, vector<4x128xf32>, vector<16x128xf32> -> vector<16x128xf32>
    %18 = arith.subf %13, %17 : vector<16x128xf32>
    %19 = arith.mulf %18, %18 : vector<16x128xf32>
    %cst_16 = arith.constant dense<0.000000e+00> : vector<16x4xf32>
    %20 = tpu.matmul %19, %14, %cst_16 {dimension_numbers = #tpu.dot_dimension_numbers<[1], [0], [0], [1], [0, 0, 1, 1], [], []>} : vector<16x128xf32>, vector<128x4xf32>, vector<16x4xf32> -> vector<16x4xf32>
    %cst_17 = arith.constant dense<0.000000e+00> : vector<16x128xf32>
    %21 = tpu.matmul %20, %15, %cst_17 {dimension_numbers = #tpu.dot_dimension_numbers<[1], [0], [0], [1], [0, 0, 1, 1], [], []>} : vector<16x4xf32>, vector<4x128xf32>, vector<16x128xf32> -> vector<16x128xf32>
    %cst_18 = arith.constant 9.99999996E-13 : f32
    %22 = vector.broadcast %cst_18 : f32 to vector<16x128xf32>
    %23 = arith.addf %21, %22 : vector<16x128xf32>
    %24 = math.rsqrt %23 : vector<16x128xf32>
    %25 = arith.mulf %18, %24 : vector<16x128xf32>
    %c0_19 = arith.constant 0 : index
    %c0_20 = arith.constant 0 : index
    %26 = vector.load %arg8[%c0_19, %c0_20] : memref<1x128xf32, #tpu.memory_space<vmem>>, vector<1x128xf32>
    %27 = vector.broadcast %26 : vector<1x128xf32> to vector<16x128xf32>
    %28 = arith.mulf %25, %27 : vector<16x128xf32>
    %c0_21 = arith.constant 0 : index
    %c0_22 = arith.constant 0 : index
    %29 = vector.load %arg9[%c0_21, %c0_22] : memref<1x128xf32, #tpu.memory_space<vmem>>, vector<1x128xf32>
    %30 = vector.broadcast %29 : vector<1x128xf32> to vector<16x128xf32>
    %31 = arith.addf %28, %30 : vector<16x128xf32>
    %c0_23 = arith.constant 0 : index
    %c0_24 = arith.constant 0 : index
    %32 = vector.load %arg10[%c0_23, %c0_24] : memref<16x128xf32, #tpu.memory_space<vmem>>, vector<16x128xf32>
    tpu.vector_store %arg10[%c0_23, %c0_24], %31 {strides = array<i32>} : memref<16x128xf32, #tpu.memory_space<vmem>>, vector<16x128xf32>,
    return
  }
  func.func @transform_0(%arg0: i32) -> (i32, i32) {
    %c0_i32 = arith.constant 0 : i32
    %c0_i32_0 = arith.constant 0 : i32
    return %c0_i32, %arg0 : i32, i32
  }
  func.func @transform_1(%arg0: i32) -> (i32, i32) {
    %c0_i32 = arith.constant 0 : i32
    %c0_i32_0 = arith.constant 0 : i32
    %c0_i32_1 = arith.constant 0 : i32
    return %c0_i32, %c0_i32_0 : i32, i32
  }
  func.func @transform_2(%arg0: i32) -> (i32, i32) {
    %c0_i32 = arith.constant 0 : i32
    %c0_i32_0 = arith.constant 0 : i32
    %c0_i32_1 = arith.constant 0 : i32
    return %c0_i32, %c0_i32_0 : i32, i32
  }
  func.func @transform_3(%arg0: i32) -> (i32, i32) {
    %c0_i32 = arith.constant 0 : i32
    %c0_i32_0 = arith.constant 0 : i32
    %c0_i32_1 = arith.constant 0 : i32
    return %c0_i32, %c0_i32_0 : i32, i32
  }
  func.func @transform_4(%arg0: i32) -> (i32, i32) {
    %c0_i32 = arith.constant 0 : i32
    %c0_i32_0 = arith.constant 0 : i32
    %c0_i32_1 = arith.constant 0 : i32
    return %c0_i32, %c0_i32_0 : i32, i32
  }
  func.func @transform_5(%arg0: i32) -> (i32, i32) {
    %c0_i32 = arith.constant 0 : i32
    %c0_i32_0 = arith.constant 0 : i32
    %c0_i32_1 = arith.constant 0 : i32
    return %c0_i32, %c0_i32_0 : i32, i32
  }
  func.func @transform_6(%arg0: i32) -> (i32, i32) {
    %c0_i32 = arith.constant 0 : i32
    %c0_i32_0 = arith.constant 0 : i32
    %c0_i32_1 = arith.constant 0 : i32
    return %c0_i32, %c0_i32_0 : i32, i32
  }
  func.func @transform_7(%arg0: i32) -> (i32, i32) {
    %c0_i32 = arith.constant 0 : i32
    %c0_i32_0 = arith.constant 0 : i32
    %c0_i32_1 = arith.constant 0 : i32
    return %c0_i32, %c0_i32_0 : i32, i32
  }
  func.func @transform_8(%arg0: i32) -> (i32, i32) {
    %c0_i32 = arith.constant 0 : i32
    %c0_i32_0 = arith.constant 0 : i32
    %c0_i32_1 = arith.constant 0 : i32
    return %c0_i32, %c0_i32_0 : i32, i32
  }
  func.func @transform_9(%arg0: i32) -> (i32, i32) {
    %c0_i32 = arith.constant 0 : i32
    %c0_i32_0 = arith.constant 0 : i32
    return %c0_i32, %arg0 : i32, i32
  }
}

</mosaic_0001>

<llo_original>
// kernel: tpu_custom_call.1
$region0: #{tpu_custom_call.1}
  #allocation0 [shape = 'u32[]', space=smem, size = 0x4, offset = 0x4, fixed_abs, tag = 'smem constant byte address 0x4 - core index']
  #allocation1 [shape = 'u32[72,128]{1,0:T(1,128)}', space=vmem, size = 0x9000, scoped, tag = 'internal scratch']
  %s0 = inlined_call_operand.vmem [shape: f32[16,128], index: 0, kind: input, shape index: {}]
  %s1 = inlined_call_operand.vmem [shape: bf16[32,16], index: 1, kind: input, shape index: {}]
  %s2 = inlined_call_operand.vmem [shape: bf16[16,32], index: 2, kind: input, shape index: {}]
  %s3 = inlined_call_operand.vmem [shape: f32[32,128], index: 3, kind: input, shape index: {}]
  %s4 = inlined_call_operand.vmem [shape: f32[32,128], index: 4, kind: input, shape index: {}]
  %s5 = inlined_call_operand.vmem [shape: f32[128,4], index: 5, kind: input, shape index: {}]
  %s6 = inlined_call_operand.vmem [shape: f32[4,128], index: 6, kind: input, shape index: {}]
  %s7 = inlined_call_operand.vmem [shape: f32[1,128], index: 7, kind: input, shape index: {}]
  %s8 = inlined_call_operand.vmem [shape: f32[1,128], index: 8, kind: input, shape index: {}]
  %s9 = inlined_call_operand.hbm [shape: f32[16,128], index: 9, kind: output, shape index: {}]
  %s10 = sld [smem:[#allocation0]]
  $region46: #{tpu_custom_call.1} parent=0
    _
  %s12 = ssub.s32 1, %s10
  %s13 = scalar_select 0, %s12, %s10
  $region1: #{tpu_custom_call.1} parent=0
    #allocation2 [shape = 'u8[8192]{0}', space=vmem, size = 0x2000, scoped, tag = 'output window, operand 0, single buffered']
    #allocation3 [shape = 's32[1]{0}', space=sflag, size = 0x4, scoped, tag = 'scoped memory for tpu_custom_call.1']
    %14 = vsyncpa [#allocation3], 0
    // Predicated region
    $region2: #{tpu_custom_call.1} parent=1 // pred_check
      _
    $region3: #{tpu_custom_call.1} parent=1 // pred_check_branch
      %16 = sbr.rel (0) target = $region5
    $region4: #{tpu_custom_call.1} parent=1 // pred_region
      _
    $region5: #{tpu_custom_call.1} parent=1 // pred_fallthru
      _
    // Predicated region
    $region6: #{tpu_custom_call.1} parent=1 // pred_check
      _
    $region7: #{tpu_custom_call.1} parent=1 // pred_check_branch
      %18 = sbr.rel (0) target = $region9
    $region8: #{tpu_custom_call.1} parent=1 // pred_region
      _
    $region9: #{tpu_custom_call.1} parent=1 // pred_fallthru
      _
    // Predicated region
    $region10: #{tpu_custom_call.1} parent=1 // pred_check
      _
    $region11: #{tpu_custom_call.1} parent=1 // pred_check_branch
      %20 = sbr.rel (0) target = $region13
    $region12: #{tpu_custom_call.1} parent=1 // pred_region
      _
    $region13: #{tpu_custom_call.1} parent=1 // pred_fallthru
      _
    // Predicated region
    $region14: #{tpu_custom_call.1} parent=1 // pred_check
      _
    $region15: #{tpu_custom_call.1} parent=1 // pred_check_branch
      %22 = sbr.rel (0) target = $region17
    $region16: #{tpu_custom_call.1} parent=1 // pred_region
      _
    $region17: #{tpu_custom_call.1} parent=1 // pred_fallthru
      _
    // Predicated region
    $region18: #{tpu_custom_call.1} parent=1 // pred_check
      _
    $region19: #{tpu_custom_call.1} parent=1 // pred_check_branch
      %24 = sbr.rel (0) target = $region21
    $region20: #{tpu_custom_call.1} parent=1 // pred_region
      _
    $region21: #{tpu_custom_call.1} parent=1 // pred_fallthru
      _
    // Predicated region
    $region22: #{tpu_custom_call.1} parent=1 // pred_check
      _
    $region23: #{tpu_custom_call.1} parent=1 // pred_check_branch
      %26 = sbr.rel (0) target = $region25
    $region24: #{tpu_custom_call.1} parent=1 // pred_region
      _
    $region25: #{tpu_custom_call.1} parent=1 // pred_fallthru
      _
    // Predicated region
    $region26: #{tpu_custom_call.1} parent=1 // pred_check
      _
    $region27: #{tpu_custom_call.1} parent=1 // pred_check_branch
      %28 = sbr.rel (0) target = $region29
    $region28: #{tpu_custom_call.1} parent=1 // pred_region
      _
    $region29: #{tpu_custom_call.1} parent=1 // pred_fallthru
      _
    // Predicated region
    $region30: #{tpu_custom_call.1} parent=1 // pred_check
      _
    $region31: #{tpu_custom_call.1} parent=1 // pred_check_branch
      %30 = sbr.rel (0) target = $region33
    $region32: #{tpu_custom_call.1} parent=1 // pred_region
      _
    $region33: #{tpu_custom_call.1} parent=1 // pred_fallthru
      _
    // Predicated region
    $region34: #{tpu_custom_call.1} parent=1 // pred_check
      _
    $region35: #{tpu_custom_call.1} parent=1 // pred_check_branch
      %32 = sbr.rel (0) target = $region37
    $region36: #{tpu_custom_call.1} parent=1 // pred_region
      _
    $region37: #{tpu_custom_call.1} parent=1 // pred_fallthru
      _
    %v34 = vld [vmem:[%s0] sm:$0xff]
    %v35 = vld [vmem:[%s0 + $0x8] sm:$0xff]
    %v36 = vld [vmem:[%s1] sm:$0xf]
    %v37 = vld [vmem:[%s1 + $0x4] sm:$0xf]
    %v38 = vld [vmem:[%s1 + $0x8] sm:$0xf]
    %v39 = vld [vmem:[%s1 + $0xc] sm:$0xf]
    %v40 = vpack.c.bf16 %v35, %v34
    %v45 = vunpack.c.l.b16 %v36
    %v46 = vunpack.c.l.b16 %v37
    %v47 = vunpack.c.l.b16 %v38
    %v48 = vunpack.c.l.b16 %v39
    %v49 = vpack.c.b16 %v46, %v45
    %v50 = vpack.c.b16 %v48, %v47
    %vm51 = vcmask 130048
    %v53 = vsel %vm51, %v49, 0
    %v56 = vsel %vm51, %v50, 0
    %58 = vmatpush.bf16.msra.mxu0 0
    %59 = vmatpush.bf16.msra.mxu0 0
    %60 = vmatpush.bf16.msra.mxu0 0
    %61 = vmatpush.bf16.msra.mxu0 0
    %62 = vmatpush.bf16.msra.mxu0 0
    %63 = vmatpush.bf16.msra.mxu0 0
    %64 = vmatpush.bf16.msra.mxu0 0
    %65 = vmatpush.bf16.msra.mxu0 %v40
    %66 = vmatmul.bf16.gmra.mxu0 %v53
    %v67 = vpop.f32.mrf.mxu0
    %v68 = vadd.f32 0.0, %v67
    %v69 = vpop.f32.mrf.mxu0
    %v70 = vadd.f32 0.0, %v69
    %71 = vmatmul.bf16.gmra.mxu0 %v56
    %v72 = vpop.f32.mrf.mxu0
    %v73 = vadd.f32 0.0, %v72
    %v74 = vpop.f32.mrf.mxu0
    %v75 = vadd.f32 0.0, %v74
    %76 = vdwg.mxu0
    %v77 = vld [vmem:[%s3] sm:$0xff]
    %v78 = vld [vmem:[%s3 + $0x8] sm:$0xff]
    %v79 = vld [vmem:[%s3 + $0x10] sm:$0xff]
    %v80 = vld [vmem:[%s3 + $0x18] sm:$0xff]
    %v81 = vmul.f32 %v68, %v77
    %v82 = vmul.f32 %v70, %v78
    %v83 = vmul.f32 %v73, %v79
    %v84 = vmul.f32 %v75, %v80
    %v85 = vld [vmem:[%s4] sm:$0xff]
    %v86 = vld [vmem:[%s4 + $0x8] sm:$0xff]
    %v87 = vld [vmem:[%s4 + $0x10] sm:$0xff]
    %v88 = vld [vmem:[%s4 + $0x18] sm:$0xff]
    %v89 = vmul.f32 %v73, %v85
    %v90 = vmul.f32 %v75, %v86
    %v91 = vmul.f32 %v68, %v87
    %v92 = vmul.f32 %v70, %v88
    %v93 = vadd.f32 %v81, %v89
    %v94 = vadd.f32 %v82, %v90
    %v95 = vadd.f32 %v83, %v91
    %v96 = vadd.f32 %v84, %v92
    %v97 = vld [vmem:[%s2] sm:$0xf]
    %v98 = vld [vmem:[%s2 + $0x4] sm:$0xf]
    %v99 = vpack.c.bf16 %v94, %v93
    %v100 = vpack.c.bf16 %v96, %v95
    %v103 = vunpack.c.l.b16 %v97
    %v104 = vunpack.c.l.b16 %v98
    %v105 = vpack.c.b16 %v104, %v103
    %vm106 = vcmask 261120
    %v108 = vsel %vm106, %v105, 0
    %110 = vmatpush.bf16.msra.mxu0 0
    %111 = vmatpush.bf16.msra.mxu0 0
    %112 = vmatpush.bf16.msra.mxu0 0
    %113 = vmatpush.bf16.msra.mxu0 0
    %114 = vmatpush.bf16.msra.mxu0 0
    %115 = vmatpush.bf16.msra.mxu0 0
    %116 = vmatpush.bf16.msra.mxu0 %v100
    %117 = vmatpush.bf16.msra.mxu0 %v99
    %118 = vmatmul.bf16.gmra.mxu0 %v108
    %v119 = vpop.f32.mrf.mxu0
    %v120 = vadd.f32 %v34, %v119
    %v121 = vpop.f32.mrf.mxu0
    %v122 = vadd.f32 %v35, %v121
    %123 = vdwg.mxu0
    %v124 = vld [vmem:[%s5] sm:$0xff]
    %v125 = vld [vmem:[%s5 + $0x8] sm:$0xff]
    %v126 = vld [vmem:[%s5 + $0x10] sm:$0xff]
    %v127 = vld [vmem:[%s5 + $0x18] sm:$0xff]
    %v128 = vld [vmem:[%s5 + $0x20] sm:$0xff]
    %v129 = vld [vmem:[%s5 + $0x28] sm:$0xff]
    %v130 = vld [vmem:[%s5 + $0x30] sm:$0xff]
    %v131 = vld [vmem:[%s5 + $0x38] sm:$0xff]
    %v132 = vld [vmem:[%s5 + $0x40] sm:$0xff]
    %v133 = vld [vmem:[%s5 + $0x48] sm:$0xff]
    %v134 = vld [vmem:[%s5 + $0x50] sm:$0xff]
    %v135 = vld [vmem:[%s5 + $0x58] sm:$0xff]
    %v136 = vld [vmem:[%s5 + $0x60] sm:$0xff]
    %v137 = vld [vmem:[%s5 + $0x68] sm:$0xff]
    %v138 = vld [vmem:[%s5 + $0x70] sm:$0xff]
    %v139 = vld [vmem:[%s5 + $0x78] sm:$0xff]
    %v140 = vld [vmem:[%s6] sm:$0xf]
    %141 = vmatpush.msra.mxu0 %v139
    %142 = vmatpush.msra.mxu0 %v138
    %143 = vmatpush.msra.mxu0 %v137
    %144 = vmatpush.msra.mxu0 %v136
    %145 = vmatpush.msra.mxu0 %v135
    %146 = vmatpush.msra.mxu0 %v134
    %147 = vmatpush.msra.mxu0 %v133
    %148 = vmatpush.msra.mxu0 %v132
    %149 = vmatpush.msra.mxu0 %v131
    %150 = vmatpush.msra.mxu0 %v130
    %151 = vmatpush.msra.mxu0 %v129
    %152 = vmatpush.msra.mxu0 %v128
    %153 = vmatpush.msra.mxu0 %v127
    %154 = vmatpush.msra.mxu0 %v126
    %155 = vmatpush.msra.mxu0 %v125
    %156 = vmatpush.msra.mxu0 %v124
    %157 = vmatmul.f32.gmra.mxu0 %v120
    %v158 = vpop.f32.mrf.mxu0
    %v159 = vadd.f32 0.0, %v158
    %160 = vmatmul.f32.gmra.mxu0 %v122
    %v161 = vpop.f32.mrf.mxu0
    %v162 = vadd.f32 0.0, %v161
    %163 = vdwg.mxu0
    %vm164 = vcmask 31744
    %v166 = vsel %vm164, %v159, 0
    %v169 = vsel %vm164, %v162, 0
    %vm171 = vcmask 1043456
    %v173 = vsel %vm171, %v140, 0
    %175 = vmatpush.msra.mxu0 0.0
    %176 = vmatpush.msra.mxu0 0.0
    %177 = vmatpush.msra.mxu0 0.0
    %178 = vmatpush.msra.mxu0 0.0
    %179 = vmatpush.msra.mxu0 0.0
    %180 = vmatpush.msra.mxu0 0.0
    %181 = vmatpush.msra.mxu0 0.0
    %182 = vmatpush.msra.mxu0 0.0
    %183 = vmatpush.msra.mxu0 0.0
    %184 = vmatpush.msra.mxu0 0.0
    %185 = vmatpush.msra.mxu0 0.0
    %186 = vmatpush.msra.mxu0 0.0
    %187 = vmatpush.msra.mxu0 0.0
    %188 = vmatpush.msra.mxu0 0.0
    %189 = vmatpush.msra.mxu0 0.0
    %190 = vmatpush.msra.mxu0 %v173
    %191 = vmatmul.f32.gmra.mxu0 %v166
    %v192 = vpop.f32.mrf.mxu0
    %v193 = vadd.f32 0.0, %v192
    %194 = vmatmul.f32.gmra.mxu0 %v169
    %v195 = vpop.f32.mrf.mxu0
    %v196 = vadd.f32 0.0, %v195
    %197 = vdwg.mxu0
    %v198 = vsub.f32 %v120, %v193
    %v199 = vsub.f32 %v122, %v196
    %v200 = vmul.f32 %v198, %v198
    %v201 = vmul.f32 %v199, %v199
    %202 = vmatpush.msra.mxu0 %v139
    %203 = vmatpush.msra.mxu0 %v138
    %204 = vmatpush.msra.mxu0 %v137
    %205 = vmatpush.msra.mxu0 %v136
    %206 = vmatpush.msra.mxu0 %v135
    %207 = vmatpush.msra.mxu0 %v134
    %208 = vmatpush.msra.mxu0 %v133
    %209 = vmatpush.msra.mxu0 %v132
    %210 = vmatpush.msra.mxu0 %v131
    %211 = vmatpush.msra.mxu0 %v130
    %212 = vmatpush.msra.mxu0 %v129
    %213 = vmatpush.msra.mxu0 %v128
    %214 = vmatpush.msra.mxu0 %v127
    %215 = vmatpush.msra.mxu0 %v126
    %216 = vmatpush.msra.mxu0 %v125
    %217 = vmatpush.msra.mxu0 %v124
    %218 = vmatmul.f32.gmra.mxu0 %v200
    %v219 = vpop.f32.mrf.mxu0
    %v220 = vadd.f32 0.0, %v219
    %221 = vmatmul.f32.gmra.mxu0 %v201
    %v222 = vpop.f32.mrf.mxu0
    %v223 = vadd.f32 0.0, %v222
    %224 = vdwg.mxu0
    %v226 = vsel %vm164, %v220, 0
    %v229 = vsel %vm164, %v223, 0
    %231 = vmatpush.msra.mxu0 0.0
    %232 = vmatpush.msra.mxu0 0.0
    %233 = vmatpush.msra.mxu0 0.0
    %234 = vmatpush.msra.mxu0 0.0
    %235 = vmatpush.msra.mxu0 0.0
    %236 = vmatpush.msra.mxu0 0.0
    %237 = vmatpush.msra.mxu0 0.0
    %238 = vmatpush.msra.mxu0 0.0
    %239 = vmatpush.msra.mxu0 0.0
    %240 = vmatpush.msra.mxu0 0.0
    %241 = vmatpush.msra.mxu0 0.0
    %242 = vmatpush.msra.mxu0 0.0
    %243 = vmatpush.msra.mxu0 0.0
    %244 = vmatpush.msra.mxu0 0.0
    %245 = vmatpush.msra.mxu0 0.0
    %246 = vmatpush.msra.mxu0 %v173
    %247 = vmatmul.f32.gmra.mxu0 %v226
    %v248 = vpop.f32.mrf.mxu0
    %v249 = vadd.f32 1e-12, %v248
    %250 = vmatmul.f32.gmra.mxu0 %v229
    %v251 = vpop.f32.mrf.mxu0
    %v252 = vadd.f32 1e-12, %v251
    %253 = vdwg.mxu0
    %v254 = vrsqrt.pop %v249
    %v255 = vmul.f32 %v254, %v249
    %v256 = vmul.f32 %v255, %v254
    %v257 = vmul.f32 0.5, %v256
    %v258 = vsub.f32 1.5, %v257
    %v259 = vmul.f32 %v254, %v258
    %vm260 = vweird.f32 %v249
    %vm261 = vweird.f32 %v254
    %vm262 = vmor %vm260, %vm261
    %v263 = vsel %vm262, %v254, %v259
    %v264 = vrsqrt.pop %v252
    %v265 = vmul.f32 %v264, %v252
    %v266 = vmul.f32 %v265, %v264
    %v267 = vmul.f32 0.5, %v266
    %v268 = vsub.f32 1.5, %v267
    %v269 = vmul.f32 %v264, %v268
    %vm270 = vweird.f32 %v252
    %vm271 = vweird.f32 %v264
    %vm272 = vmor %vm270, %vm271
    %v273 = vsel %vm272, %v264, %v269
    %v274 = vmul.f32 %v198, %v263
    %v275 = vmul.f32 %v199, %v273
    %v276 = vld [vmem:[%s7] sm:$0x1]
    %v278 = vperm.slane %v276, 0
    %v280 = vmul.f32 %v274, %v278
    %v281 = vmul.f32 %v275, %v278
    %v282 = vld [vmem:[%s8] sm:$0x1]
    %v284 = vperm.slane %v282, 0
    %v286 = vadd.f32 %v280, %v284
    %v287 = vadd.f32 %v281, %v284
    %288 = vst [vmem:[#allocation2] sm:$0xff] %v286
    %289 = vst [vmem:[#allocation2 + $0x8] sm:$0xff] %v287
    // Predicated region
    $region38: #{tpu_custom_call.1} parent=1 // pred_check
      _
    $region39: #{tpu_custom_call.1} parent=1 // pred_check_branch
      %291 = sbr.rel (0) target = $region41
    $region40: #{tpu_custom_call.1} parent=1 // pred_region
      %293 = vsyncadd [#allocation3], 0
      %s294 = sshll.u32 [#allocation2], 4
      %s295 = int_to_ptr.vmem [resolvable:$true] %s294
      %s296 = sshll.u32 %s9, 4
      %s297 = int_to_ptr.hbm [resolvable:$true] %s296
      %302 = dma.vmem_to_hbm [thread:$0]  %s295, 256, %s297, [#allocation3], 128, 128, 8
    $region41: #{tpu_custom_call.1} parent=1 // pred_fallthru
      _
    // Predicated region
    $region42: #{tpu_custom_call.1} parent=1 // pred_check
      _
    $region43: #{tpu_custom_call.1} parent=1 // pred_check_branch
      %304 = sbr.rel (0) target = $region45
    $region44: #{tpu_custom_call.1} parent=1 // pred_region
      %306 = dma.done [#allocation3], 256
    $region45: #{tpu_custom_call.1} parent=1 // pred_fallthru
      _
    %307 = vsyncpa [#allocation3], 1

</llo_original>
